<compile_context>
chip_gen: v6e
topology: v6e:2x2x1
jax: 0.10.0
libtpu: 0.0.40
codegen_flags: <defaults>
</compile_context>

<pallas_src>
import functools
import math

import jax
import jax.numpy as jnp
from jax.experimental import pallas as pl
from jax.experimental.pallas import tpu as pltpu


def _round_up(a: int, b: int) -> int:
    return ((a + b - 1) // b) * b


def _ln_kernel(x_ref, w_ref, o_ref, *, eps):
    """Plain path: (TR, C) row tile with the normalized dim C on the lane axis."""
    x = x_ref[...].astype(jnp.float32)
    mean = jnp.mean(x, axis=-1, keepdims=True)
    ex2 = jnp.mean(x * x, axis=-1, keepdims=True)
    var = ex2 - mean * mean                      # biased variance, single pass
    inv = jax.lax.rsqrt(var + eps)
    w = w_ref[...].astype(jnp.float32)           # (1, C) broadcasts over rows
    # BiasFree LN scales x (NOT x - mean).
    o_ref[...] = (x * inv * w).astype(o_ref.dtype)


def _ln_packed_kernel(x_ref, w_ref, seg_ref, o_ref, *, eps):
    """Lane-dense path: each lane row packs k = 128 // C independent LN rows.

    x_ref   : (TR, k*C)   k packed rows per lane row
    w_ref   : (1,  k*C)   weight tiled k times
    seg_ref : (k*C, k*C)  block-diagonal matrix, entries 1/C within a segment
    """
    x = x_ref[...].astype(jnp.float32)
    seg = seg_ref[...]
    # One MXU matmul per statistic gives every lane position its own segment's
    # mean / E[x^2] (segmented reduce + broadcast-back fused into one dot).
    mean = jnp.dot(x, seg, preferred_element_type=jnp.float32)
    ex2 = jnp.dot(x * x, seg, preferred_element_type=jnp.float32)
    var = ex2 - mean * mean
    inv = jax.lax.rsqrt(var + eps)
    w = w_ref[...].astype(jnp.float32)
    o_ref[...] = (x * inv * w).astype(o_ref.dtype)


def biasfree_layernorm(x, weight, *, eps=1e-5,
                       target_tile_bytes=2 * 1024 * 1024, interpret=False):
    """BiasFree_LayerNorm forward.  x: (..., C), weight: (C,). Same shape/dtype out."""
    orig_shape = x.shape
    C = orig_shape[-1]
    assert weight.shape == (C,), (weight.shape, C)
    R = math.prod(orig_shape[:-1]) if len(orig_shape) > 1 else 1

    itemsize = jnp.dtype(x.dtype).itemsize
    sub_mult = {4: 8, 2: 16, 1: 32}.get(itemsize, 8)   # sublane multiple per dtype

    # Lane-dense packing factor (only when C divides 128 and rows reshape cleanly).
    k = 128 // C if (0 < C < 128 and 128 % C == 0) else 1
    if k > 1 and R % k != 0:
        k = 1
    packed = k > 1

    R_eff = R // k
    C_eff = C * k

    # Adaptive row tile: ~target_tile_bytes per input tile (1-4 MiB band),
    # rounded to the sublane multiple; keep >= 2 grid steps when possible so
    # the "parallel" axis can use both v7x TensorCores.
    tr = max(sub_mult,
             (target_tile_bytes // max(1, C_eff * itemsize)) // sub_mult * sub_mult)
    if tr >= R_eff:
        if R_eff >= 2 * sub_mult:
            tr = _round_up(pl.cdiv(R_eff, 2), sub_mult)
        else:
            tr = R_eff                       # tiny input: one full-extent block
    grid = (pl.cdiv(R_eff, tr),)             # partial last block: masked by Pallas

    x2d = x.reshape(R_eff, C_eff)            # free row-major reshape (no HBM copy)

    if packed:
        w2d = jnp.tile(weight, k).reshape(1, C_eff)
        j = jnp.arange(C_eff)
        seg = jnp.where((j[:, None] // C) == (j[None, :] // C),
                        jnp.float32(1.0 / C), jnp.float32(0.0))
        kernel = functools.partial(_ln_packed_kernel, eps=eps)
        operands = (x2d, w2d, seg)
        in_specs = [
            pl.BlockSpec((tr, C_eff), lambda i: (i, 0)),       # row tile
            pl.BlockSpec((1, C_eff), lambda i: (0, 0)),        # tiled weight (reused)
            pl.BlockSpec((C_eff, C_eff), lambda i: (0, 0)),    # segment matrix (reused)
        ]
        extra_flops = 2 * 2 * R_eff * C_eff * C_eff            # two (TR,kC)@(kC,kC) dots
    else:
        w2d = weight.reshape(1, C)
        kernel = functools.partial(_ln_kernel, eps=eps)
        operands = (x2d, w2d)
        in_specs = [
            pl.BlockSpec((tr, C_eff), lambda i: (i, 0)),
            pl.BlockSpec((1, C_eff), lambda i: (0, 0)),
        ]
        extra_flops = 0

    cost = pl.CostEstimate(
        flops=8 * R * C + extra_flops,
        transcendentals=R,
        bytes_accessed=(2 * R * C + C) * itemsize,
    )

    grid_spec = pltpu.PrefetchScalarGridSpec(
        num_scalar_prefetch=0,
        grid=grid,
        in_specs=in_specs,
        out_specs=pl.BlockSpec((tr, C_eff), lambda i: (i, 0)),
    )

    out = pl.pallas_call(
        kernel,
        out_shape=jax.ShapeDtypeStruct((R_eff, C_eff), x.dtype),
        grid_spec=grid_spec,
        compiler_params=pltpu.CompilerParams(
            dimension_semantics=("parallel",),
            vmem_limit_bytes=32 * 1024 * 1024,   # headroom for f32 upcast temps
        ),
        cost_estimate=cost,
        interpret=interpret,
    )(*operands)

    return out.reshape(orig_shape)


def _reference(x, weight, eps=1e-5):
    """Pure-JAX reference matching the PyTorch module."""
    xf = x.astype(jnp.float32)
    var = jnp.var(xf, axis=-1, keepdims=True)          # biased (ddof=0)
    y = xf / jnp.sqrt(var + eps) * weight.astype(jnp.float32)
    return y.astype(x.dtype)


if __name__ == "__main__":
    key = jax.random.PRNGKey(0)
    kx1, kw1, kx2, kw2 = jax.random.split(key, 4)

    # Case 1: Restormer-style tokens (batch, h*w, hidden) with a small hidden
    # dim (32) -> exercises the lane-dense packed path (k = 128 // 32 = 4).
    B, HW, C1 = 2, 16 * 16, 32
    x1 = jax.random.normal(kx1, (B, HW, C1), dtype=jnp.float32)
    w1 = 1.0 + 0.1 * jax.random.normal(kw1, (C1,), dtype=jnp.float32)
    out1 = jax.block_until_ready(biasfree_layernorm(x1, w1))
    assert out1.shape == x1.shape and out1.dtype == x1.dtype
    ref1 = _reference(x1, w1)
    err1 = float(jnp.max(jnp.abs(out1 - ref1)))
    # Loose bound leaves headroom for generations whose MXU runs the f32
    # segment-matrix dot with bf16 passes; with full-precision passes the
    # observed error is ~1e-6.
    assert err1 < 1e-2, err1

    # Case 2: hidden = 128 with a row count (5*8 = 40) that does not divide the
    # row tile -> exercises the plain path and the masked partial last block.
    x2 = jax.random.normal(kx2, (5, 8, 128), dtype=jnp.float32)
    w2 = 1.0 + 0.1 * jax.random.normal(kw2, (128,), dtype=jnp.float32)
    out2 = jax.block_until_ready(biasfree_layernorm(x2, w2))
    assert out2.shape == x2.shape and out2.dtype == x2.dtype
    ref2 = _reference(x2, w2)
    err2 = float(jnp.max(jnp.abs(out2 - ref2)))
    assert jnp.allclose(out2, ref2, rtol=1e-5, atol=1e-5), err2

    print("KERNEL_OK")
</pallas_src>

<mosaic_0001>
module attributes {stable_mosaic.version = 11 : i64} {
  func.func @_ln_packed_kernel(%arg0: i32, %arg1: memref<64x128xf32, #tpu.memory_space<vmem>>, %arg2: memref<1x128xf32, #tpu.memory_space<vmem>>, %arg3: memref<128x128xf32, #tpu.memory_space<vmem>>, %arg4: memref<64x128xf32, #tpu.memory_space<vmem>>) attributes {dimension_semantics = [#tpu.dimension_semantics<parallel>], iteration_bounds = array<i64: 2>, scalar_prefetch = 0 : i64, scratch_operands = 0 : i64, tpu.core_type = #tpu.core_type<tc>, window_params = [{transform_indices = @transform_0, window_bounds = array<i64: 64, 128>}, {pipeline_mode = #tpu.pipeline_mode<synchronous>, transform_indices = @transform_1, window_bounds = array<i64: 1, 128>}, {pipeline_mode = #tpu.pipeline_mode<synchronous>, transform_indices = @transform_2, window_bounds = array<i64: 128, 128>}, {transform_indices = @transform_3, window_bounds = array<i64: 64, 128>}]} {
    %c0 = arith.constant 0 : index
    %c0_0 = arith.constant 0 : index
    %0 = vector.load %arg1[%c0, %c0_0] : memref<64x128xf32, #tpu.memory_space<vmem>>, vector<64x128xf32>
    %c0_1 = arith.constant 0 : index
    %c0_2 = arith.constant 0 : index
    %1 = vector.load %arg3[%c0_1, %c0_2] : memref<128x128xf32, #tpu.memory_space<vmem>>, vector<128x128xf32>
    %cst = arith.constant dense<0.000000e+00> : vector<64x128xf32>
    %2 = tpu.matmul %0, %1, %cst {dimension_numbers = #tpu.dot_dimension_numbers<[1], [0], [0], [1], [0, 0, 1, 1], [], []>} : vector<64x128xf32>, vector<128x128xf32>, vector<64x128xf32> -> vector<64x128xf32>
    %3 = arith.mulf %0, %0 : vector<64x128xf32>
    %cst_3 = arith.constant dense<0.000000e+00> : vector<64x128xf32>
    %4 = tpu.matmul %3, %1, %cst_3 {dimension_numbers = #tpu.dot_dimension_numbers<[1], [0], [0], [1], [0, 0, 1, 1], [], []>} : vector<64x128xf32>, vector<128x128xf32>, vector<64x128xf32> -> vector<64x128xf32>
    %5 = arith.mulf %2, %2 : vector<64x128xf32>
    %6 = arith.subf %4, %5 : vector<64x128xf32>
    %cst_4 = arith.constant 9.99999974E-6 : f32
    %7 = vector.broadcast %cst_4 : f32 to vector<64x128xf32>
    %8 = arith.addf %6, %7 : vector<64x128xf32>
    %9 = math.rsqrt %8 : vector<64x128xf32>
    %c0_5 = arith.constant 0 : index
    %c0_6 = arith.constant 0 : index
    %10 = vector.load %arg2[%c0_5, %c0_6] : memref<1x128xf32, #tpu.memory_space<vmem>>, vector<1x128xf32>
    %11 = arith.mulf %0, %9 : vector<64x128xf32>
    %12 = vector.broadcast %10 : vector<1x128xf32> to vector<64x128xf32>
    %13 = arith.mulf %11, %12 : vector<64x128xf32>
    %c0_7 = arith.constant 0 : index
    %c0_8 = arith.constant 0 : index
    %14 = vector.load %arg4[%c0_7, %c0_8] : memref<64x128xf32, #tpu.memory_space<vmem>>, vector<64x128xf32>
    tpu.vector_store %arg4[%c0_7, %c0_8], %13 {strides = array<i32>} : memref<64x128xf32, #tpu.memory_space<vmem>>, vector<64x128xf32>,
    return
  }
  func.func @transform_0(%arg0: i32) -> (i32, i32) {
    %c0_i32 = arith.constant 0 : i32
    %c0_i32_0 = arith.constant 0 : i32
    return %arg0, %c0_i32 : i32, i32
  }
  func.func @transform_1(%arg0: i32) -> (i32, i32) {
    %c0_i32 = arith.constant 0 : i32
    %c0_i32_0 = arith.constant 0 : i32
    %c0_i32_1 = arith.constant 0 : i32
    return %c0_i32, %c0_i32_0 : i32, i32
  }
  func.func @transform_2(%arg0: i32) -> (i32, i32) {
    %c0_i32 = arith.constant 0 : i32
    %c0_i32_0 = arith.constant 0 : i32
    %c0_i32_1 = arith.constant 0 : i32
    return %c0_i32, %c0_i32_0 : i32, i32
  }
  func.func @transform_3(%arg0: i32) -> (i32, i32) {
    %c0_i32 = arith.constant 0 : i32
    %c0_i32_0 = arith.constant 0 : i32
    return %arg0, %c0_i32 : i32, i32
  }
}

</mosaic_0001>

<llo_original>
// kernel: tpu_custom_call.1
$region0: #{tpu_custom_call.1}
  #allocation0 [shape = 'u32[]', space=smem, size = 0x4, offset = 0x4, fixed_abs, tag = 'smem constant byte address 0x4 - core index']
  #allocation1 [shape = 'u32[144,128]{1,0:T(1,128)}', space=vmem, size = 0x12000, scoped, tag = 'internal scratch']
  %s0 = inlined_call_operand.hbm [shape: f32[128,128], index: 0, kind: input, shape index: {}]
  %s1 = inlined_call_operand.vmem [shape: f32[1,128], index: 1, kind: input, shape index: {}]
  %s2 = inlined_call_operand.hbm [shape: f32[128,128], index: 2, kind: input, shape index: {}]
  %s3 = inlined_call_operand.hbm [shape: f32[128,128], index: 3, kind: output, shape index: {}]
  %s4 = sld [smem:[#allocation0]]
  $region53: #{tpu_custom_call.1} parent=0
    _
  %s6 = ssub.s32 1, %s4
  %s7 = scalar_select 0, %s6, %s4
  $region1: #{tpu_custom_call.1} parent=0
    #allocation2 [shape = 'u8[65536]{0}', space=vmem, size = 0x10000, scoped, tag = 'input window, operand 0']
    #allocation3 [shape = 's32[2]{0}', space=sflag, size = 0x8, scoped, tag = 'scoped memory for tpu_custom_call.1']
    #allocation4 [shape = 's32[2]{0}', space=sflag, size = 0x8, scoped, tag = 'scoped memory for tpu_custom_call.1']
    #allocation5 [shape = 'u8[65536]{0}', space=vmem, size = 0x10000, scoped, tag = 'input window, operand 2, single buffered']
    #allocation6 [shape = 's32[1]{0}', space=sflag, size = 0x4, scoped, tag = 'scoped memory for tpu_custom_call.1']
    #allocation7 [shape = 'u8[65536]{0}', space=vmem, size = 0x10000, scoped, tag = 'output window, operand 0']
    %8 = vsyncpa [#allocation3], 0
    %s9 = scalar_lea.sflag [#allocation3], 1
    %10 = vsyncpa %s9, 0
    %11 = vsyncpa [#allocation6], 0
    %12 = vsyncpa [#allocation4], 0
    %s13 = scalar_lea.sflag [#allocation4], 1
    %14 = vsyncpa %s13, 0
    loop: start=0, step=1, limit=4
    $region2: #{tpu_custom_call.1} parent=1 // loop_pre_header
      _
    $region3: #{tpu_custom_call.1} parent=1 // loop_header
      %s16 = sphi 0, %s20
      %p17 = scmp.ge.s32.totalorder %s16, 4
      %s26 = sphi 0, %s28
      %s29 = sphi 0, %s26
      %s30 = sphi 0, %s29
      %s46 = sphi 0, %s30
      %s50 = sphi 0, %s50
      %s52 = sphi 0, %s50
      %s53 = sphi 0, %s52
      %s67 = sphi 0, %s53
      %s71 = sphi 0, %s71
      %s73 = sphi 0, %s71
      %s74 = sphi 0, %s73
      %s88 = sphi 0, %s74
      %s94 = sphi 0, %s96
      %s97 = sphi 0, %s94
      %s98 = sphi 0, %s97
      %s114 = sphi 0, %s98
    $region4: #{tpu_custom_call.1} parent=1 // loop_header_branch
      %19 = sbr.rel (%p17) target = $region8
    $region5: #{tpu_custom_call.1} parent=1 // loop_body
      %s21 = ssub.s32 %s16, 1
      %s22 = ssub.s32 %s16, 2
      %s23 = sadd.s32 %s16, 1
      %s24 = ssub.s32 %s16, %s23
      %p25 = scmp.eq.s32.totalorder %s24, 0
      %s27 = sadd.s32 %s26, 1
      %s28 = scalar_select %p25, %s26, %s27
      %p31 = pneg %p25
      %p32 = scmp.eq.s32.totalorder %s16, 1
      %p33 = por %p31, %p32
      %p34 = scmp.ne.s32.totalorder %s26, %s29
      %p35 = scmp.eq.s32.totalorder %s16, 0
      %p36 = por %p34, %p35
      %p37 = scmp.ne.s32.totalorder %s26, %s29
      %p38 = scmp.eq.s32.totalorder %s21, 1
      %p39 = por %p37, %p38
      %p40 = scmp.ne.s32.totalorder %s29, %s30
      %p41 = scmp.eq.s32.totalorder %s21, 0
      %p42 = por %p40, %p41
      %p43 = scmp.ne.s32.totalorder %s29, %s30
      %p44 = scmp.eq.s32.totalorder %s22, 1
      %p45 = por %p43, %p44
      %p47 = scmp.ne.s32.totalorder %s30, %s46
      %p48 = scmp.eq.s32.totalorder %s22, 0
      %p49 = por %p47, %p48
      %s51 = sadd.s32 %s50, 1
      %p54 = scmp.eq.s32.totalorder %s16, 1
      %p55 = scmp.ne.s32.totalorder %s50, %s52
      %p56 = scmp.eq.s32.totalorder %s16, 0
      %p57 = por %p55, %p56
      %p58 = scmp.ne.s32.totalorder %s50, %s52
      %p59 = scmp.eq.s32.totalorder %s21, 1
      %p60 = por %p58, %p59
      %p61 = scmp.ne.s32.totalorder %s52, %s53
      %p62 = scmp.eq.s32.totalorder %s21, 0
      %p63 = por %p61, %p62
      %p64 = scmp.ne.s32.totalorder %s52, %s53
      %p65 = scmp.eq.s32.totalorder %s22, 1
      %p66 = por %p64, %p65
      %p68 = scmp.ne.s32.totalorder %s53, %s67
      %p69 = scmp.eq.s32.totalorder %s22, 0
      %p70 = por %p68, %p69
      %s72 = sadd.s32 %s71, 1
      %p75 = scmp.eq.s32.totalorder %s16, 1
      %p76 = scmp.ne.s32.totalorder %s71, %s73
      %p77 = scmp.eq.s32.totalorder %s16, 0
      %p78 = por %p76, %p77
      %p79 = scmp.ne.s32.totalorder %s71, %s73
      %p80 = scmp.eq.s32.totalorder %s21, 1
      %p81 = por %p79, %p80
      %p82 = scmp.ne.s32.totalorder %s73, %s74
      %p83 = scmp.eq.s32.totalorder %s21, 0
      %p84 = por %p82, %p83
      %p85 = scmp.ne.s32.totalorder %s73, %s74
      %p86 = scmp.eq.s32.totalorder %s22, 1
      %p87 = por %p85, %p86
      %p89 = scmp.ne.s32.totalorder %s74, %s88
      %p90 = scmp.eq.s32.totalorder %s22, 0
      %p91 = por %p89, %p90
      %s92 = ssub.s32 %s16, %s23
      %p93 = scmp.eq.s32.totalorder %s92, 0
      %s95 = sadd.s32 %s94, 1
      %s96 = scalar_select %p93, %s94, %s95
      %p99 = pneg %p93
      %p100 = scmp.eq.s32.totalorder %s16, 1
      %p101 = por %p99, %p100
      %p102 = scmp.ne.s32.totalorder %s94, %s97
      %p103 = scmp.eq.s32.totalorder %s16, 0
      %p104 = por %p102, %p103
      %p105 = scmp.ne.s32.totalorder %s94, %s97
      %p106 = scmp.eq.s32.totalorder %s21, 1
      %p107 = por %p105, %p106
      %p108 = scmp.ne.s32.totalorder %s97, %s98
      %p109 = scmp.eq.s32.totalorder %s21, 0
      %p110 = por %p108, %p109
      %p111 = scmp.ne.s32.totalorder %s97, %s98
      %p112 = scmp.eq.s32.totalorder %s22, 1
      %p113 = por %p111, %p112
      %p115 = scmp.ne.s32.totalorder %s98, %s114
      %p116 = scmp.eq.s32.totalorder %s22, 0
      %p117 = por %p115, %p116
      %p118 = scmp.le.s32.totalorder 1, %s16
      %p119 = scmp.lt.s32.totalorder %s16, 3
      %p120 = pnand %p118, %p119
      %p121 = pneg %p120
      // Predicated region
      $region9: #{tpu_custom_call.1} parent=5 // pred_check
        _
      $region10: #{tpu_custom_call.1} parent=5 // pred_check_branch
        %123 = sbr.rel (%p120) target = $region12
      $region11: #{tpu_custom_call.1} parent=5 // pred_region
        %s124 = ssub.s32 %s16, 1
        // Predicated region
        $region13: #{tpu_custom_call.1} parent=11 // pred_check
          %p125 = pneg %p63
        $region14: #{tpu_custom_call.1} parent=11 // pred_check_branch
          %127 = sbr.rel (%p125) target = $region16
        $region15: #{tpu_custom_call.1} parent=11 // pred_region
          _
        $region16: #{tpu_custom_call.1} parent=11 // pred_fallthru
          _
        // Predicated region
        $region17: #{tpu_custom_call.1} parent=11 // pred_check
          %p128 = pneg %p84
        $region18: #{tpu_custom_call.1} parent=11 // pred_check_branch
          %130 = sbr.rel (%p128) target = $region20
        $region19: #{tpu_custom_call.1} parent=11 // pred_region
          %s132 = ssub.s32 2048, 2048
          %133 = vsyncadd [#allocation6], %s132
          %s134 = sshll.u32 [#allocation5], 4
          %s135 = int_to_ptr.vmem [resolvable:$true] %s134
          %140 = dma.hbm_to_vmem [thread:$0]  %s2, 2048, %s135, [#allocation6], 128, 128, 8
        $region20: #{tpu_custom_call.1} parent=11 // pred_fallthru
          _
      $region12: #{tpu_custom_call.1} parent=5 // pred_fallthru
        _
      %p141 = scmp.lt.s32.totalorder %s16, 2
      // Predicated region
      $region21: #{tpu_custom_call.1} parent=5 // pred_check
        %p142 = pneg %p141
      $region22: #{tpu_custom_call.1} parent=5 // pred_check_branch
        %144 = sbr.rel (%p142) target = $region24
      $region23: #{tpu_custom_call.1} parent=5 // pred_region
        // Predicated region
        $region25: #{tpu_custom_call.1} parent=23 // pred_check
          %p145 = pneg %p36
        $region26: #{tpu_custom_call.1} parent=23 // pred_check_branch
          %147 = sbr.rel (%p145) target = $region28
        $region27: #{tpu_custom_call.1} parent=23 // pred_region
          %s148 = sand.u32 %s26, 1
          %s149 = scalar_lea.sflag [#allocation3], %s148
          %s150 = sand.u32 %s26, 1
          %s151 = smul.addr %s150, 64
          %s152 = scalar_lea.vmem [#allocation2], %s151
          %s153 = smul.u32 8, %s16
          %s155 = ssub.s32 1024, 1024
          %156 = vsyncadd %s149, %s155
          %s157 = smul.addr %s153, 128
          %s158 = scalar_lea.hbm %s0, %s157
          %s159 = sshll.u32 %s152, 4
          %s160 = int_to_ptr.vmem [resolvable:$true] %s159
          %165 = dma.hbm_to_vmem [thread:$0]  %s158, 1024, %s160, %s149, 128, 128, 8
        $region28: #{tpu_custom_call.1} parent=23 // pred_fallthru
          _
      $region24: #{tpu_custom_call.1} parent=5 // pred_fallthru
        _
      %p166 = scmp.le.s32.totalorder 1, %s16
      %p167 = scmp.lt.s32.totalorder %s16, 3
      %p168 = pnand %p166, %p167
      %p169 = pneg %p168
      // Predicated region
      $region29: #{tpu_custom_call.1} parent=5 // pred_check
        _
      $region30: #{tpu_custom_call.1} parent=5 // pred_check_branch
        %171 = sbr.rel (%p168) target = $region32
      $region31: #{tpu_custom_call.1} parent=5 // pred_region
        %s172 = ssub.s32 %s16, 1
        %s173 = sand.u32 %s29, 1
        %s174 = scalar_lea.sflag [#allocation3], %s173
        %s175 = sand.u32 %s29, 1
        %s176 = smul.addr %s175, 64
        %s177 = scalar_lea.vmem [#allocation2], %s176
        // Predicated region
        $region33: #{tpu_custom_call.1} parent=31 // pred_check
          %p178 = pneg %p42
        $region34: #{tpu_custom_call.1} parent=31 // pred_check_branch
          %180 = sbr.rel (%p178) target = $region36
        $region35: #{tpu_custom_call.1} parent=31 // pred_region
          %181 = dma.done %s174, 1024
        $region36: #{tpu_custom_call.1} parent=31 // pred_fallthru
          _
        // Predicated region
        $region37: #{tpu_custom_call.1} parent=31 // pred_check
          %p182 = pneg %p84
        $region38: #{tpu_custom_call.1} parent=31 // pred_check_branch
          %184 = sbr.rel (%p182) target = $region40
        $region39: #{tpu_custom_call.1} parent=31 // pred_region
          %185 = dma.done [#allocation6], 2048
        $region40: #{tpu_custom_call.1} parent=31 // pred_fallthru
          _
        %s186 = sand.u32 %s29, 1
        %s187 = scalar_lea.sflag [#allocation3], %s186
        %s188 = sand.u32 %s29, 1
        %s189 = smul.addr %s188, 64
        %s190 = scalar_lea.vmem [#allocation2], %s189
        %p191 = pneg %p42
        %p192 = pneg %p39
        %p193 = pneg %p63
        %p194 = pneg %p60
        %p195 = pneg %p84
        %p196 = pneg %p81
        %p197 = pneg %p110
        %p198 = pneg %p107
        %s199 = sand.u32 %s97, 1
        %s200 = scalar_lea.sflag [#allocation4], %s199
        %s201 = sand.u32 %s97, 1
        %s202 = smul.addr %s201, 64
        %s203 = scalar_lea.vmem [#allocation7], %s202
        %s204 = smul.u32 8, %s21
        %s205 = smul.u32 8, %s21
        %v206 = vld [vmem:[%s177] sm:$0xff]
        %v207 = vld [vmem:[%s177 + $0x8] sm:$0xff]
        %v208 = vld [vmem:[%s177 + $0x10] sm:$0xff]
        %v209 = vld [vmem:[%s177 + $0x18] sm:$0xff]
        %v210 = vld [vmem:[%s177 + $0x20] sm:$0xff]
        %v211 = vld [vmem:[%s177 + $0x28] sm:$0xff]
        %v212 = vld [vmem:[%s177 + $0x30] sm:$0xff]
        %v213 = vld [vmem:[%s177 + $0x38] sm:$0xff]
        %v214 = vld [vmem:[#allocation5] sm:$0xff]
        %v215 = vld [vmem:[#allocation5 + $0x8] sm:$0xff]
        %v216 = vld [vmem:[#allocation5 + $0x10] sm:$0xff]
        %v217 = vld [vmem:[#allocation5 + $0x18] sm:$0xff]
        %v218 = vld [vmem:[#allocation5 + $0x20] sm:$0xff]
        %v219 = vld [vmem:[#allocation5 + $0x28] sm:$0xff]
        %v220 = vld [vmem:[#allocation5 + $0x30] sm:$0xff]
        %v221 = vld [vmem:[#allocation5 + $0x38] sm:$0xff]
        %v222 = vld [vmem:[#allocation5 + $0x40] sm:$0xff]
        %v223 = vld [vmem:[#allocation5 + $0x48] sm:$0xff]
        %v224 = vld [vmem:[#allocation5 + $0x50] sm:$0xff]
        %v225 = vld [vmem:[#allocation5 + $0x58] sm:$0xff]
        %v226 = vld [vmem:[#allocation5 + $0x60] sm:$0xff]
        %v227 = vld [vmem:[#allocation5 + $0x68] sm:$0xff]
        %v228 = vld [vmem:[#allocation5 + $0x70] sm:$0xff]
        %v229 = vld [vmem:[#allocation5 + $0x78] sm:$0xff]
        %230 = vmatprep.subr.mxu0 0.0
        %231 = vmatpush1.msra.mxu0 %v229
        %232 = vmatprep.subr.mxu0 0.0
        %233 = vmatpush1.msra.mxu0 %v228
        %234 = vmatprep.subr.mxu0 0.0
        %235 = vmatpush1.msra.mxu0 %v227
        %236 = vmatprep.subr.mxu0 0.0
        %237 = vmatpush1.msra.mxu0 %v226
        %238 = vmatprep.subr.mxu0 0.0
        %239 = vmatpush1.msra.mxu0 %v225
        %240 = vmatprep.subr.mxu0 0.0
        %241 = vmatpush1.msra.mxu0 %v224
        %242 = vmatprep.subr.mxu0 0.0
        %243 = vmatpush1.msra.mxu0 %v223
        %244 = vmatprep.subr.mxu0 0.0
        %245 = vmatpush1.msra.mxu0 %v222
        %246 = vmatprep.subr.mxu0 0.0
        %247 = vmatpush1.msra.mxu0 %v221
        %248 = vmatprep.subr.mxu0 0.0
        %249 = vmatpush1.msra.mxu0 %v220
        %250 = vmatprep.subr.mxu0 0.0
        %251 = vmatpush1.msra.mxu0 %v219
        %252 = vmatprep.subr.mxu0 0.0
        %253 = vmatpush1.msra.mxu0 %v218
        %254 = vmatprep.subr.mxu0 0.0
        %255 = vmatpush1.msra.mxu0 %v217
        %256 = vmatprep.subr.mxu0 0.0
        %257 = vmatpush1.msra.mxu0 %v216
        %258 = vmatprep.subr.mxu0 0.0
        %259 = vmatpush1.msra.mxu0 %v215
        %260 = vmatprep.subr.mxu0 0.0
        %261 = vmatpush1.msra.mxu0 %v214
        %262 = vmatprep.subr.mxu0 0.0
        %263 = vmatpush2.msra.mxu0 0.0
        %264 = vmatprep.subr.mxu0 0.0
        %265 = vmatpush2.msra.mxu0 0.0
        %266 = vmatprep.subr.mxu0 0.0
        %267 = vmatpush2.msra.mxu0 0.0
        %268 = vmatprep.subr.mxu0 0.0
        %269 = vmatpush2.msra.mxu0 0.0
        %270 = vmatprep.subr.mxu0 0.0
        %271 = vmatpush2.msra.mxu0 0.0
        %272 = vmatprep.subr.mxu0 0.0
        %273 = vmatpush2.msra.mxu0 0.0
        %274 = vmatprep.subr.mxu0 0.0
        %275 = vmatpush2.msra.mxu0 0.0
        %276 = vmatprep.subr.mxu0 0.0
        %277 = vmatpush2.msra.mxu0 0.0
        %278 = vmatprep.subr.mxu0 0.0
        %279 = vmatpush2.msra.mxu0 0.0
        %280 = vmatprep.subr.mxu0 0.0
        %281 = vmatpush2.msra.mxu0 0.0
        %282 = vmatprep.subr.mxu0 0.0
        %283 = vmatpush2.msra.mxu0 0.0
        %284 = vmatprep.subr.mxu0 0.0
        %285 = vmatpush2.msra.mxu0 0.0
        %286 = vmatprep.subr.mxu0 0.0
        %287 = vmatpush2.msra.mxu0 0.0
        %288 = vmatprep.subr.mxu0 0.0
        %289 = vmatpush2.msra.mxu0 0.0
        %290 = vmatprep.subr.mxu0 0.0
        %291 = vmatpush2.msra.mxu0 0.0
        %292 = vmatprep.subr.mxu0 0.0
        %293 = vmatpush2.msra.mxu0 0.0
        %294 = vmatprep.mubr.f32.mxu0 0.0
        %295 = vmatmul.mubr.f32.gmra.mxu0 %v206
        %v296 = vpop.f32.mrf.mxu0
        %v297 = vadd.f32 0.0, %v296
        %v298 = vpop.f32.mrf.mxu0
        %299 = vmatprep.mubr.f32.mxu0 0.0
        %300 = vmatmul.mubr.f32.gmra.mxu0 %v207
        %v301 = vpop.f32.mrf.mxu0
        %v302 = vadd.f32 0.0, %v301
        %v303 = vpop.f32.mrf.mxu0
        %304 = vmatprep.mubr.f32.mxu0 0.0
        %305 = vmatmul.mubr.f32.gmra.mxu0 %v208
        %v306 = vpop.f32.mrf.mxu0
        %v307 = vadd.f32 0.0, %v306
        %v308 = vpop.f32.mrf.mxu0
        %309 = vmatprep.mubr.f32.mxu0 0.0
        %310 = vmatmul.mubr.f32.gmra.mxu0 %v209
        %v311 = vpop.f32.mrf.mxu0
        %v312 = vadd.f32 0.0, %v311
        %v313 = vpop.f32.mrf.mxu0
        %314 = vmatprep.mubr.f32.mxu0 0.0
        %315 = vmatmul.mubr.f32.gmra.mxu0 %v210
        %v316 = vpop.f32.mrf.mxu0
        %v317 = vadd.f32 0.0, %v316
        %v318 = vpop.f32.mrf.mxu0
        %319 = vmatprep.mubr.f32.mxu0 0.0
        %320 = vmatmul.mubr.f32.gmra.mxu0 %v211
        %v321 = vpop.f32.mrf.mxu0
        %v322 = vadd.f32 0.0, %v321
        %v323 = vpop.f32.mrf.mxu0
        %324 = vmatprep.mubr.f32.mxu0 0.0
        %325 = vmatmul.mubr.f32.gmra.mxu0 %v212
        %v326 = vpop.f32.mrf.mxu0
        %v327 = vadd.f32 0.0, %v326
        %v328 = vpop.f32.mrf.mxu0
        %329 = vmatprep.mubr.f32.mxu0 0.0
        %330 = vmatmul.mubr.f32.gmra.mxu0 %v213
        %v331 = vpop.f32.mrf.mxu0
        %v332 = vadd.f32 0.0, %v331
        %v333 = vpop.f32.mrf.mxu0
        %334 = vdwg.mxu0
        %v335 = vmul.f32 %v206, %v206
        %v336 = vmul.f32 %v207, %v207
        %v337 = vmul.f32 %v208, %v208
        %v338 = vmul.f32 %v209, %v209
        %v339 = vmul.f32 %v210, %v210
        %v340 = vmul.f32 %v211, %v211
        %v341 = vmul.f32 %v212, %v212
        %v342 = vmul.f32 %v213, %v213
        %343 = vmatprep.subr.mxu0 0.0
        %344 = vmatpush1.msra.mxu0 %v229
        %345 = vmatprep.subr.mxu0 0.0
        %346 = vmatpush1.msra.mxu0 %v228
        %347 = vmatprep.subr.mxu0 0.0
        %348 = vmatpush1.msra.mxu0 %v227
        %349 = vmatprep.subr.mxu0 0.0
        %350 = vmatpush1.msra.mxu0 %v226
        %351 = vmatprep.subr.mxu0 0.0
        %352 = vmatpush1.msra.mxu0 %v225
        %353 = vmatprep.subr.mxu0 0.0
        %354 = vmatpush1.msra.mxu0 %v224
        %355 = vmatprep.subr.mxu0 0.0
        %356 = vmatpush1.msra.mxu0 %v223
        %357 = vmatprep.subr.mxu0 0.0
        %358 = vmatpush1.msra.mxu0 %v222
        %359 = vmatprep.subr.mxu0 0.0
        %360 = vmatpush1.msra.mxu0 %v221
        %361 = vmatprep.subr.mxu0 0.0
        %362 = vmatpush1.msra.mxu0 %v220
        %363 = vmatprep.subr.mxu0 0.0
        %364 = vmatpush1.msra.mxu0 %v219
        %365 = vmatprep.subr.mxu0 0.0
        %366 = vmatpush1.msra.mxu0 %v218
        %367 = vmatprep.subr.mxu0 0.0
        %368 = vmatpush1.msra.mxu0 %v217
        %369 = vmatprep.subr.mxu0 0.0
        %370 = vmatpush1.msra.mxu0 %v216
        %371 = vmatprep.subr.mxu0 0.0
        %372 = vmatpush1.msra.mxu0 %v215
        %373 = vmatprep.subr.mxu0 0.0
        %374 = vmatpush1.msra.mxu0 %v214
        %375 = vmatprep.subr.mxu0 0.0
        %376 = vmatpush2.msra.mxu0 0.0
        %377 = vmatprep.subr.mxu0 0.0
        %378 = vmatpush2.msra.mxu0 0.0
        %379 = vmatprep.subr.mxu0 0.0
        %380 = vmatpush2.msra.mxu0 0.0
        %381 = vmatprep.subr.mxu0 0.0
        %382 = vmatpush2.msra.mxu0 0.0
        %383 = vmatprep.subr.mxu0 0.0
        %384 = vmatpush2.msra.mxu0 0.0
        %385 = vmatprep.subr.mxu0 0.0
        %386 = vmatpush2.msra.mxu0 0.0
        %387 = vmatprep.subr.mxu0 0.0
        %388 = vmatpush2.msra.mxu0 0.0
        %389 = vmatprep.subr.mxu0 0.0
        %390 = vmatpush2.msra.mxu0 0.0
        %391 = vmatprep.subr.mxu0 0.0
        %392 = vmatpush2.msra.mxu0 0.0
        %393 = vmatprep.subr.mxu0 0.0
        %394 = vmatpush2.msra.mxu0 0.0
        %395 = vmatprep.subr.mxu0 0.0
        %396 = vmatpush2.msra.mxu0 0.0
        %397 = vmatprep.subr.mxu0 0.0
        %398 = vmatpush2.msra.mxu0 0.0
        %399 = vmatprep.subr.mxu0 0.0
        %400 = vmatpush2.msra.mxu0 0.0
        %401 = vmatprep.subr.mxu0 0.0
        %402 = vmatpush2.msra.mxu0 0.0
        %403 = vmatprep.subr.mxu0 0.0
        %404 = vmatpush2.msra.mxu0 0.0
        %405 = vmatprep.subr.mxu0 0.0
        %406 = vmatpush2.msra.mxu0 0.0
        %407 = vmatprep.mubr.f32.mxu0 0.0
        %408 = vmatmul.mubr.f32.gmra.mxu0 %v335
        %v409 = vpop.f32.mrf.mxu0
        %v410 = vadd.f32 0.0, %v409
        %v411 = vpop.f32.mrf.mxu0
        %412 = vmatprep.mubr.f32.mxu0 0.0
        %413 = vmatmul.mubr.f32.gmra.mxu0 %v336
        %v414 = vpop.f32.mrf.mxu0
        %v415 = vadd.f32 0.0, %v414
        %v416 = vpop.f32.mrf.mxu0
        %417 = vmatprep.mubr.f32.mxu0 0.0
        %418 = vmatmul.mubr.f32.gmra.mxu0 %v337
        %v419 = vpop.f32.mrf.mxu0
        %v420 = vadd.f32 0.0, %v419
        %v421 = vpop.f32.mrf.mxu0
        %422 = vmatprep.mubr.f32.mxu0 0.0
        %423 = vmatmul.mubr.f32.gmra.mxu0 %v338
        %v424 = vpop.f32.mrf.mxu0
        %v425 = vadd.f32 0.0, %v424
        %v426 = vpop.f32.mrf.mxu0
        %427 = vmatprep.mubr.f32.mxu0 0.0
        %428 = vmatmul.mubr.f32.gmra.mxu0 %v339
        %v429 = vpop.f32.mrf.mxu0
        %v430 = vadd.f32 0.0, %v429
        %v431 = vpop.f32.mrf.mxu0
        %432 = vmatprep.mubr.f32.mxu0 0.0
        %433 = vmatmul.mubr.f32.gmra.mxu0 %v340
        %v434 = vpop.f32.mrf.mxu0
        %v435 = vadd.f32 0.0, %v434
        %v436 = vpop.f32.mrf.mxu0
        %437 = vmatprep.mubr.f32.mxu0 0.0
        %438 = vmatmul.mubr.f32.gmra.mxu0 %v341
        %v439 = vpop.f32.mrf.mxu0
        %v440 = vadd.f32 0.0, %v439
        %v441 = vpop.f32.mrf.mxu0
        %442 = vmatprep.mubr.f32.mxu0 0.0
        %443 = vmatmul.mubr.f32.gmra.mxu0 %v342
        %v444 = vpop.f32.mrf.mxu0
        %v445 = vadd.f32 0.0, %v444
        %v446 = vpop.f32.mrf.mxu0
        %447 = vdwg.mxu0
        %v448 = vmul.f32 %v297, %v297
        %v449 = vmul.f32 %v302, %v302
        %v450 = vmul.f32 %v307, %v307
        %v451 = vmul.f32 %v312, %v312
        %v452 = vmul.f32 %v317, %v317
        %v453 = vmul.f32 %v322, %v322
        %v454 = vmul.f32 %v327, %v327
        %v455 = vmul.f32 %v332, %v332
        %v456 = vsub.f32 %v410, %v448
        %v457 = vsub.f32 %v415, %v449
        %v458 = vsub.f32 %v420, %v450
        %v459 = vsub.f32 %v425, %v451
        %v460 = vsub.f32 %v430, %v452
        %v461 = vsub.f32 %v435, %v453
        %v462 = vsub.f32 %v440, %v454
        %v463 = vsub.f32 %v445, %v455
        %v464 = vadd.f32 %v456, 1e-05
        %v465 = vadd.f32 %v457, 1e-05
        %v466 = vadd.f32 %v458, 1e-05
        %v467 = vadd.f32 %v459, 1e-05
        %v468 = vadd.f32 %v460, 1e-05
        %v469 = vadd.f32 %v461, 1e-05
        %v470 = vadd.f32 %v462, 1e-05
        %v471 = vadd.f32 %v463, 1e-05
        %v472 = vrsqrt.pop %v464
        %v473 = vrsqrt.pop %v465
        %v474 = vrsqrt.pop %v466
        %v475 = vrsqrt.pop %v467
        %v476 = vrsqrt.pop %v468
        %v477 = vrsqrt.pop %v469
        %v478 = vrsqrt.pop %v470
        %v479 = vrsqrt.pop %v471
        %v480 = vld [vmem:[%s1] sm:$0x1]
        %v481 = vmul.f32 %v206, %v472
        %v482 = vmul.f32 %v207, %v473
        %v483 = vmul.f32 %v208, %v474
        %v484 = vmul.f32 %v209, %v475
        %v485 = vmul.f32 %v210, %v476
        %v486 = vmul.f32 %v211, %v477
        %v487 = vmul.f32 %v212, %v478
        %v488 = vmul.f32 %v213, %v479
        %v490 = vlaneseq
        %v491 = vshrl.u32 %v490, 7
        %v492 = vsub.s32 0, %v491
        %v493 = vrot.slane %v480, %v492
        %v495 = vmul.f32 %v481, %v493
        %v496 = vmul.f32 %v482, %v493
        %v497 = vmul.f32 %v483, %v493
        %v498 = vmul.f32 %v484, %v493
        %v499 = vmul.f32 %v485, %v493
        %v500 = vmul.f32 %v486, %v493
        %v501 = vmul.f32 %v487, %v493
        %v502 = vmul.f32 %v488, %v493
        %503 = vst [vmem:[%s203] sm:$0xff] %v495
        %504 = vst [vmem:[%s203 + $0x8] sm:$0xff] %v496
        %505 = vst [vmem:[%s203 + $0x10] sm:$0xff] %v497
        %506 = vst [vmem:[%s203 + $0x18] sm:$0xff] %v498
        %507 = vst [vmem:[%s203 + $0x20] sm:$0xff] %v499
        %508 = vst [vmem:[%s203 + $0x28] sm:$0xff] %v500
        %509 = vst [vmem:[%s203 + $0x30] sm:$0xff] %v501
        %510 = vst [vmem:[%s203 + $0x38] sm:$0xff] %v502
        %s511 = sand.u32 %s97, 1
        %s512 = scalar_lea.sflag [#allocation4], %s511
        %s513 = sand.u32 %s97, 1
        %s514 = smul.addr %s513, 64
        %s515 = scalar_lea.vmem [#allocation7], %s514
        // Predicated region
        $region41: #{tpu_custom_call.1} parent=31 // pred_check
          %p516 = pneg %p107
        $region42: #{tpu_custom_call.1} parent=31 // pred_check_branch
          %518 = sbr.rel (%p516) target = $region44
        $region43: #{tpu_custom_call.1} parent=31 // pred_region
          %s519 = smul.u32 8, %s21
          %s521 = ssub.s32 1024, 1024
          %522 = vsyncadd %s512, %s521
          %s523 = smul.addr %s519, 128
          %s524 = scalar_lea.hbm %s3, %s523
          %s525 = sshll.u32 %s515, 4
          %s526 = int_to_ptr.vmem [resolvable:$true] %s525
          %531 = dma.vmem_to_hbm [thread:$0]  %s526, 1024, %s524, %s512, 128, 128, 8
        $region44: #{tpu_custom_call.1} parent=31 // pred_fallthru
          _
      $region32: #{tpu_custom_call.1} parent=5 // pred_fallthru
        _
      %p532 = scmp.le.s32.totalorder 2, %s16
      // Predicated region
      $region45: #{tpu_custom_call.1} parent=5 // pred_check
        %p533 = pneg %p532
      $region46: #{tpu_custom_call.1} parent=5 // pred_check_branch
        %535 = sbr.rel (%p533) target = $region48
      $region47: #{tpu_custom_call.1} parent=5 // pred_region
        %s536 = ssub.s32 %s16, 2
        // Predicated region
        $region49: #{tpu_custom_call.1} parent=47 // pred_check
          %p537 = pneg %p113
        $region50: #{tpu_custom_call.1} parent=47 // pred_check_branch
          %539 = sbr.rel (%p537) target = $region52
        $region51: #{tpu_custom_call.1} parent=47 // pred_region
          %s540 = sand.u32 %s98, 1
          %s541 = scalar_lea.sflag [#allocation4], %s540
          %s542 = sand.u32 %s98, 1
          %s543 = smul.addr %s542, 64
          %s544 = scalar_lea.vmem [#allocation7], %s543
          %545 = dma.done %s541, 1024
        $region52: #{tpu_custom_call.1} parent=47 // pred_fallthru
          _
      $region48: #{tpu_custom_call.1} parent=5 // pred_fallthru
        _
    $region6: #{tpu_custom_call.1} parent=1 // loop_footer
      %s20 = sadd.s32 1, %s16
    $region7: #{tpu_custom_call.1} parent=1 // loop_footer_branch
      %15 = sbr.rel target = $region3
    $region8: #{tpu_custom_call.1} parent=1 // loop_exit
      _
    %546 = vsyncpa [#allocation3], 1
    %s547 = scalar_lea.sflag [#allocation3], 1
    %548 = vsyncpa %s547, 1
    %549 = vsyncpa [#allocation6], 1
    %550 = vsyncpa [#allocation4], 1
    %s551 = scalar_lea.sflag [#allocation4], 1
    %552 = vsyncpa %s551, 1

</llo_original>
